<compile_context>
chip_gen: v7x
topology: tpu7x:2x2x1
jax: 0.10.0
libtpu: 0.0.40
codegen_flags: <defaults>
</compile_context>

<pallas_src>
import functools

import jax
import jax.numpy as jnp
from jax.experimental import pallas as pl
from jax.experimental.pallas import tpu as pltpu


def _round_up(x: int, m: int) -> int:
    return ((x + m - 1) // m) * m


def _pick_tile(padded: int, candidates) -> int:
    """Largest candidate tile that evenly divides `padded`, else `padded`."""
    for c in candidates:
        if c <= padded and padded % c == 0:
            return c
    return padded


# --------------------------------------------------------------------------
# Kernels
# --------------------------------------------------------------------------

def _linear_bias_kernel(x_ref, w_ref, b_ref, o_ref, acc_ref):
    """One (tm, tn) output tile; reduction over the K grid axis (innermost)."""
    k = pl.program_id(2)

    @pl.when(k == 0)
    def _():
        # Fold the bias into the accumulator init (f32) -> no epilogue add.
        acc_ref[...] = jnp.broadcast_to(
            b_ref[...].astype(jnp.float32), acc_ref.shape
        )

    x = x_ref[...]
    w = w_ref[...]
    if x.dtype != w.dtype:
        x = x.astype(w.dtype)  # bf16 weights -> bf16 MXU pipe, f32 accumulate
    acc_ref[...] += jnp.dot(x, w, preferred_element_type=jnp.float32)

    @pl.when(k == pl.num_programs(2) - 1)
    def _():
        o_ref[...] = acc_ref[...].astype(o_ref.dtype)


def _linear_bias_single_kernel(x_ref, w_ref, b_ref, o_ref):
    """Whole problem in one VMEM block (small-shape fast path)."""
    x = x_ref[...]
    w = w_ref[...]
    if x.dtype != w.dtype:
        x = x.astype(w.dtype)
    acc = jnp.dot(x, w, preferred_element_type=jnp.float32)
    o_ref[...] = (acc + b_ref[...].astype(jnp.float32)).astype(o_ref.dtype)


# --------------------------------------------------------------------------
# Parameter prep (runs ONCE, outside the per-call path)
# --------------------------------------------------------------------------

def init_policy_head_params(key, in_features, out_features, dtype=jnp.float32):
    """Mimics catalyst's outer_init: uniform in [-3e-3, 3e-3]; nn.Linear layout."""
    kw, kb = jax.random.split(key)
    v = 3e-3
    weight = jax.random.uniform(kw, (out_features, in_features), dtype, -v, v)
    bias = jax.random.uniform(kb, (out_features,), dtype, -v, v)
    return weight, bias


def prepare_policy_head_params(weight, bias, param_dtype=None):
    """Transpose + zero-pad nn.Linear params to lane-dense (Kp, Np) once.

    weight: (out_features, in_features), bias: (out_features,)
    param_dtype: optional storage dtype for the weight (e.g. jnp.bfloat16) —
        halves weight streaming bytes; accumulation in the kernel stays f32.
    Returns w_pad (Kp, Np), b_pad (1, Np) with Kp, Np multiples of 128.
    """
    N, K = weight.shape
    Kp, Np = _round_up(K, 128), _round_up(N, 128)
    w_t = jnp.asarray(weight).T
    if param_dtype is not None:
        w_t = w_t.astype(param_dtype)
    w_pad = jnp.pad(w_t, ((0, Kp - K), (0, Np - N)))
    b_pad = jnp.pad(jnp.asarray(bias), (0, Np - N)).reshape(1, Np)
    return w_pad, b_pad


# --------------------------------------------------------------------------
# Forward
# --------------------------------------------------------------------------

_SMALL_PROBLEM_BYTES = 4 << 20  # fast single-block path threshold


@functools.partial(jax.jit, static_argnames=("out_features",))
def policy_head_forward(state, w_pad, b_pad, *, out_features):
    """PolicyHead forward (logits policy): state @ W.T + b.

    state:  (B, in_features); w_pad/b_pad from prepare_policy_head_params()
    (state's in_features must match the one the params were prepared with).
    returns (B, out_features) in state.dtype.
    """
    B, K = state.shape
    Kp, Np = w_pad.shape
    N = out_features
    assert K <= Kp and N <= Np and b_pad.shape == (1, Np)
    out_dtype = state.dtype
    x_isz = jnp.dtype(state.dtype).itemsize
    w_isz = jnp.dtype(w_pad.dtype).itemsize
    o_isz = jnp.dtype(out_dtype).itemsize

    # ---- Small-problem fast path: one block, no grid, no M padding ---------
    small_bytes = B * Kp * x_isz + Kp * Np * w_isz + 2 * B * Np * o_isz
    if small_bytes <= _SMALL_PROBLEM_BYTES:
        x = state if Kp == K else jnp.pad(state, ((0, 0), (0, Kp - K)))
        out = pl.pallas_call(
            _linear_bias_single_kernel,
            out_shape=jax.ShapeDtypeStruct((B, Np), out_dtype),
        )(x, w_pad, b_pad)
        return out if Np == N else out[:, :N]

    # ---- Tiled grid path ----------------------------------------------------
    Mp = _round_up(B, 8)
    if Mp <= 512:
        tm = Mp
    else:
        Mp = _round_up(Mp, 128)
        tm = _pick_tile(Mp, (512, 256, 128))
    tn = _pick_tile(Np, (512, 256, 128))
    tk = _pick_tile(Kp, (1024, 512, 256, 128))

    # v7x megacore: keep >= 2 blocks on a parallel axis so both TCs get work.
    if Mp // tm == 1 and Np // tn == 1 and Np >= 256:
        for c in (256, 128):
            if c <= Np // 2 and Np % c == 0:
                tn = c
                break

    x_p = state
    if Mp != B or Kp != K:
        x_p = jnp.pad(state, ((0, Mp - B), (0, Kp - K)))

    grid = (Mp // tm, Np // tn, Kp // tk)

    # Double-buffered per-step working set + f32 accumulator, with headroom;
    # capped at 48 MiB so it stays safe on v7x (64 MiB physical VMEM).
    working_set = (
        2 * tm * tk * x_isz
        + 2 * tk * tn * w_isz
        + 2 * tn * jnp.dtype(b_pad.dtype).itemsize
        + 2 * tm * tn * o_isz
        + tm * tn * 4
    )
    vmem_limit = int(min(max(2 * working_set, 32 << 20), 48 << 20))

    out_p = pl.pallas_call(
        _linear_bias_kernel,
        out_shape=jax.ShapeDtypeStruct((Mp, Np), out_dtype),
        grid_spec=pltpu.PrefetchScalarGridSpec(
            num_scalar_prefetch=0,
            grid=grid,
            in_specs=[
                pl.BlockSpec((tm, tk), lambda i, j, k: (i, k)),  # x tile
                pl.BlockSpec((tk, tn), lambda i, j, k: (k, j)),  # W tile
                pl.BlockSpec((1, tn), lambda i, j, k: (0, j)),   # bias tile
            ],
            out_specs=pl.BlockSpec((tm, tn), lambda i, j, k: (i, j)),
            scratch_shapes=[pltpu.VMEM((tm, tn), jnp.float32)],
        ),
        compiler_params=pltpu.CompilerParams(
            # M/N tiles independent -> megacore sharding; K is the resident-
            # accumulator reduction axis (must stay innermost).
            dimension_semantics=("parallel", "parallel", "arbitrary"),
            vmem_limit_bytes=vmem_limit,
        ),
    )(x_p, w_pad, b_pad)

    if Mp == B and Np == N:
        return out_p
    return out_p[:B, :N]


# --------------------------------------------------------------------------
# Demo / correctness checks
# --------------------------------------------------------------------------

if __name__ == "__main__":
    key = jax.random.PRNGKey(0)
    k_x, k_p, k_x2, k_p2 = jax.random.split(key, 4)

    # Small config (exercises the single-block fast path).
    B, K, N = 8, 32, 8
    state = jax.random.normal(k_x, (B, K), jnp.float32)
    weight, bias = init_policy_head_params(k_p, K, N)
    w_pad, b_pad = prepare_policy_head_params(weight, bias)
    out = policy_head_forward(state, w_pad, b_pad, out_features=N)
    jax.block_until_ready(out)
    ref = state @ weight.T + bias[None, :]
    assert out.shape == (B, N)
    assert jnp.allclose(out, ref, atol=1e-5, rtol=1e-5)

    # Larger config exercising the tiled grid path (f32 weights).
    B2, K2, N2 = 768, 1536, 640
    state2 = jax.random.normal(k_x2, (B2, K2), jnp.float32)
    weight2, bias2 = init_policy_head_params(k_p2, K2, N2)
    w2_pad, b2_pad = prepare_policy_head_params(weight2, bias2)
    out2 = policy_head_forward(state2, w2_pad, b2_pad, out_features=N2)
    jax.block_until_ready(out2)
    ref2 = state2 @ weight2.T + bias2[None, :]
    assert out2.shape == (B2, N2)
    assert jnp.allclose(out2, ref2, atol=1e-4, rtol=1e-4)

    # bf16 weight-storage variant (half the weight HBM bytes, f32 accumulate).
    w2_bf16, b2_bf16 = prepare_policy_head_params(
        weight2, bias2, param_dtype=jnp.bfloat16
    )
    out3 = policy_head_forward(state2, w2_bf16, b2_bf16, out_features=N2)
    jax.block_until_ready(out3)
    ref3 = (
        jnp.dot(
            state2.astype(jnp.bfloat16),
            weight2.T.astype(jnp.bfloat16),
            preferred_element_type=jnp.float32,
        )
        + bias2[None, :]
    )
    assert out3.shape == (B2, N2)
    assert jnp.allclose(out3, ref3, atol=2e-3, rtol=2e-2)

    print("KERNEL_OK")
</pallas_src>

<mosaic_0001>
module attributes {stable_mosaic.version = 11 : i64} {
  func.func @_linear_bias_single_kernel(%arg0: memref<8x128xf32, #tpu.memory_space<vmem>>, %arg1: memref<128x128xf32, #tpu.memory_space<vmem>>, %arg2: memref<1x128xf32, #tpu.memory_space<vmem>>, %arg3: memref<8x128xf32, #tpu.memory_space<vmem>>) attributes {dimension_semantics = [], scalar_prefetch = 0 : i64, scratch_operands = 0 : i64, tpu.core_type = #tpu.core_type<tc>} {
    %c0 = arith.constant 0 : index
    %c0_0 = arith.constant 0 : index
    %0 = vector.load %arg0[%c0, %c0_0] : memref<8x128xf32, #tpu.memory_space<vmem>>, vector<8x128xf32>
    %c0_1 = arith.constant 0 : index
    %c0_2 = arith.constant 0 : index
    %1 = vector.load %arg1[%c0_1, %c0_2] : memref<128x128xf32, #tpu.memory_space<vmem>>, vector<128x128xf32>
    %cst = arith.constant dense<0.000000e+00> : vector<8x128xf32>
    %2 = tpu.matmul %0, %1, %cst {dimension_numbers = #tpu.dot_dimension_numbers<[1], [0], [0], [1], [0, 0, 1, 1], [], []>} : vector<8x128xf32>, vector<128x128xf32>, vector<8x128xf32> -> vector<8x128xf32>
    %c0_3 = arith.constant 0 : index
    %c0_4 = arith.constant 0 : index
    %3 = vector.load %arg2[%c0_3, %c0_4] : memref<1x128xf32, #tpu.memory_space<vmem>>, vector<1x128xf32>
    %4 = vector.broadcast %3 : vector<1x128xf32> to vector<8x128xf32>
    %5 = arith.addf %2, %4 : vector<8x128xf32>
    %c0_5 = arith.constant 0 : index
    %c0_6 = arith.constant 0 : index
    %6 = vector.load %arg3[%c0_5, %c0_6] : memref<8x128xf32, #tpu.memory_space<vmem>>, vector<8x128xf32>
    tpu.vector_store %arg3[%c0_5, %c0_6], %5 {strides = array<i32>} : memref<8x128xf32, #tpu.memory_space<vmem>>, vector<8x128xf32>,
    return
  }
}

</mosaic_0001>

<llo_original>
// kernel: policy_head_forward.1
$region0: #{policy_head_forward.1}
  #allocation0 [shape = 'u32[]', space=smem, size = 0x4, offset = 0x4, fixed_abs, tag = 'smem constant byte address 0x4 - core index']
  #allocation1 [shape = 'u32[144,128]{1,0:T(1,128)}', space=vmem, size = 0x12000, scoped, tag = 'internal scratch']
  %s0 = inlined_call_operand.vmem [shape: f32[8,128], index: 0, kind: input, shape index: {}]
  %s1 = inlined_call_operand.hbm [shape: f32[128,128], index: 1, kind: input, shape index: {}]
  %s2 = inlined_call_operand.vmem [shape: f32[1,128], index: 2, kind: input, shape index: {}]
  %s3 = inlined_call_operand.hbm [shape: f32[8,128], index: 3, kind: output, shape index: {}]
  %s4 = sld [smem:[#allocation0]]
  $region26: #{policy_head_forward.1} parent=0
    _
  %s6 = ssub.s32 1, %s4
  %s7 = scalar_select 0, %s6, %s4
  $region1: #{policy_head_forward.1} parent=0
    #allocation2 [shape = 'u8[65536]{0}', space=vmem, size = 0x10000, scoped, tag = 'input window, operand 1, single buffered']
    #allocation3 [shape = 's32[1]{0}', space=sflag, size = 0x4, scoped, tag = 'scoped memory for policy_head_forward.1']
    #allocation4 [shape = 's32[1]{0}', space=sflag, size = 0x4, scoped, tag = 'scoped memory for policy_head_forward.1']
    #allocation5 [shape = 'u8[4096]{0}', space=vmem, size = 0x1000, scoped, tag = 'output window, operand 0, single buffered']
    %8 = vsyncpa [#allocation3], 0
    %9 = vsyncpa [#allocation4], 0
    // Predicated region
    $region2: #{policy_head_forward.1} parent=1 // pred_check
      _
    $region3: #{policy_head_forward.1} parent=1 // pred_check_branch
      %11 = sbr.rel (0) target = $region5
    $region4: #{policy_head_forward.1} parent=1 // pred_region
      _
    $region5: #{policy_head_forward.1} parent=1 // pred_fallthru
      _
    // Predicated region
    $region6: #{policy_head_forward.1} parent=1 // pred_check
      _
    $region7: #{policy_head_forward.1} parent=1 // pred_check_branch
      %13 = sbr.rel (0) target = $region9
    $region8: #{policy_head_forward.1} parent=1 // pred_region
      %s15 = ssub.s32 2048, 2048
      %16 = vsyncadd [#allocation3], %s15
      %s17 = sshll.u32 [#allocation2], 4
      %s18 = int_to_ptr.vmem [resolvable:$true] %s17
      %23 = dma.hbm_to_vmem [thread:$0]  %s1, 2048, %s18, [#allocation3], 128, 128, 8
    $region9: #{policy_head_forward.1} parent=1 // pred_fallthru
      _
    // Predicated region
    $region10: #{policy_head_forward.1} parent=1 // pred_check
      _
    $region11: #{policy_head_forward.1} parent=1 // pred_check_branch
      %25 = sbr.rel (0) target = $region13
    $region12: #{policy_head_forward.1} parent=1 // pred_region
      _
    $region13: #{policy_head_forward.1} parent=1 // pred_fallthru
      _
    // Predicated region
    $region14: #{policy_head_forward.1} parent=1 // pred_check
      _
    $region15: #{policy_head_forward.1} parent=1 // pred_check_branch
      %27 = sbr.rel (0) target = $region17
    $region16: #{policy_head_forward.1} parent=1 // pred_region
      %28 = dma.done [#allocation3], 2048
    $region17: #{policy_head_forward.1} parent=1 // pred_fallthru
      _
    %v29 = vld [vmem:[%s0] sm:$0xff]
    %v30 = vld [vmem:[#allocation2] sm:$0xff]
    %v31 = vld [vmem:[#allocation2 + $0x8] sm:$0xff]
    %v32 = vld [vmem:[#allocation2 + $0x10] sm:$0xff]
    %v33 = vld [vmem:[#allocation2 + $0x18] sm:$0xff]
    %v34 = vld [vmem:[#allocation2 + $0x20] sm:$0xff]
    %v35 = vld [vmem:[#allocation2 + $0x28] sm:$0xff]
    %v36 = vld [vmem:[#allocation2 + $0x30] sm:$0xff]
    %v37 = vld [vmem:[#allocation2 + $0x38] sm:$0xff]
    %v38 = vld [vmem:[#allocation2 + $0x40] sm:$0xff]
    %v39 = vld [vmem:[#allocation2 + $0x48] sm:$0xff]
    %v40 = vld [vmem:[#allocation2 + $0x50] sm:$0xff]
    %v41 = vld [vmem:[#allocation2 + $0x58] sm:$0xff]
    %v42 = vld [vmem:[#allocation2 + $0x60] sm:$0xff]
    %v43 = vld [vmem:[#allocation2 + $0x68] sm:$0xff]
    %v44 = vld [vmem:[#allocation2 + $0x70] sm:$0xff]
    %v45 = vld [vmem:[#allocation2 + $0x78] sm:$0xff]
    %v46 = vld [vmem:[%s2] sm:$0x1]
    %v48 = vlaneseq
    %v49 = vshrl.u32 %v48, 7
    %v50 = vsub.s32 0, %v49
    %v51 = vrot.slane %v46, %v50
    %53 = vmatprep.subr.mxu0 0.0
    %54 = vmatpush1.msra.mxu0 %v30
    %55 = vmatprep.subr.mxu0 0.0
    %56 = vmatpush1.msra.mxu0 %v31
    %57 = vmatprep.subr.mxu0 0.0
    %58 = vmatpush1.msra.mxu0 %v32
    %59 = vmatprep.subr.mxu0 0.0
    %60 = vmatpush1.msra.mxu0 %v33
    %61 = vmatprep.subr.mxu0 0.0
    %62 = vmatpush1.msra.mxu0 %v34
    %63 = vmatprep.subr.mxu0 0.0
    %64 = vmatpush1.msra.mxu0 %v35
    %65 = vmatprep.subr.mxu0 0.0
    %66 = vmatpush1.msra.mxu0 %v36
    %67 = vmatprep.subr.mxu0 0.0
    %68 = vmatpush1.msra.mxu0 %v37
    %69 = vmatprep.subr.mxu0 0.0
    %70 = vmatpush1.msra.mxu0 %v38
    %71 = vmatprep.subr.mxu0 0.0
    %72 = vmatpush1.msra.mxu0 %v39
    %73 = vmatprep.subr.mxu0 0.0
    %74 = vmatpush1.msra.mxu0 %v40
    %75 = vmatprep.subr.mxu0 0.0
    %76 = vmatpush1.msra.mxu0 %v41
    %77 = vmatprep.subr.mxu0 0.0
    %78 = vmatpush1.msra.mxu0 %v42
    %79 = vmatprep.subr.mxu0 0.0
    %80 = vmatpush1.msra.mxu0 %v43
    %81 = vmatprep.subr.mxu0 0.0
    %82 = vmatpush1.msra.mxu0 %v44
    %83 = vmatprep.subr.mxu0 0.0
    %84 = vmatpush1.msra.mxu0 %v45
    %85 = vmatprep.subr.mxu0 0.0
    %86 = vmatpush1.msra.mxu0 0.0
    %87 = vmatprep.subr.mxu0 0.0
    %88 = vmatpush1.msra.mxu0 0.0
    %89 = vmatprep.subr.mxu0 0.0
    %90 = vmatpush1.msra.mxu0 0.0
    %91 = vmatprep.subr.mxu0 0.0
    %92 = vmatpush1.msra.mxu0 0.0
    %93 = vmatprep.subr.mxu0 0.0
    %94 = vmatpush1.msra.mxu0 0.0
    %95 = vmatprep.subr.mxu0 0.0
    %96 = vmatpush1.msra.mxu0 0.0
    %97 = vmatprep.subr.mxu0 0.0
    %98 = vmatpush1.msra.mxu0 0.0
    %99 = vmatprep.subr.mxu0 0.0
    %100 = vmatpush1.msra.mxu0 0.0
    %101 = vmatprep.subr.mxu0 0.0
    %102 = vmatpush1.msra.mxu0 0.0
    %103 = vmatprep.subr.mxu0 0.0
    %104 = vmatpush1.msra.mxu0 0.0
    %105 = vmatprep.subr.mxu0 0.0
    %106 = vmatpush1.msra.mxu0 0.0
    %107 = vmatprep.subr.mxu0 0.0
    %108 = vmatpush1.msra.mxu0 0.0
    %109 = vmatprep.subr.mxu0 0.0
    %110 = vmatpush1.msra.mxu0 0.0
    %111 = vmatprep.subr.mxu0 0.0
    %112 = vmatpush1.msra.mxu0 0.0
    %113 = vmatprep.subr.mxu0 0.0
    %114 = vmatpush1.msra.mxu0 0.0
    %115 = vmatprep.subr.mxu0 0.0
    %116 = vmatpush1.msra.mxu0 0.0
    %117 = vmatprep.mubr.f32.mxu0 0.0
    %118 = vmatmul.mubr.f32.gmra.mrb[0].mxu0 %v29
    %v119 = vpop.f32.mrb[0].mxu0
    %v120 = vadd.f32 %v51, %v119
    %v121 = vpop.f32.mrb[0].mxu0
    %122 = vdwg.mxu0
    %123 = vst [vmem:[#allocation5] sm:$0xff] %v120
    // Predicated region
    $region18: #{policy_head_forward.1} parent=1 // pred_check
      _
    $region19: #{policy_head_forward.1} parent=1 // pred_check_branch
      %125 = sbr.rel (0) target = $region21
    $region20: #{policy_head_forward.1} parent=1 // pred_region
      %s127 = ssub.s32 128, 128
      %128 = vsyncadd [#allocation4], %s127
      %s130 = sshll.u32 [#allocation5], 4
      %s131 = int_to_ptr.vmem [resolvable:$true] %s130
      %133 = dma.vmem_to_hbm [thread:$0]  %s131, 128, %s3, [#allocation4]
    $region21: #{policy_head_forward.1} parent=1 // pred_fallthru
      _
    // Predicated region
    $region22: #{policy_head_forward.1} parent=1 // pred_check
      _
    $region23: #{policy_head_forward.1} parent=1 // pred_check_branch
      %135 = sbr.rel (0) target = $region25
    $region24: #{policy_head_forward.1} parent=1 // pred_region
      %136 = dma.done [#allocation4], 128
    $region25: #{policy_head_forward.1} parent=1 // pred_fallthru
      _
    %137 = vsyncpa [#allocation3], 1
    %138 = vsyncpa [#allocation4], 1

</llo_original>
